<compile_context>
chip_gen: v7x
topology: tpu7x:2x2x1
jax: 0.10.0
libtpu: 0.0.40
codegen_flags: <defaults>
</compile_context>

<pallas_src>
import functools

import jax
import jax.numpy as jnp
from jax.experimental import pallas as pl
from jax.experimental.pallas import tpu as pltpu


# ----------------------------- activations ---------------------------------
def _softplus(x):
    return jnp.logaddexp(x, 0.0)


def _hardtanh(x):
    return jnp.clip(x, -1.0, 1.0)


def _hardsigmoid(x):
    return jnp.clip(x / 6.0 + 0.5, 0.0, 1.0)


def _tanhshrink(x):
    return x - jnp.tanh(x)


_ACTIVATIONS = {
    "relu": lambda x: jnp.maximum(x, 0.0),
    "tanh": jnp.tanh,
    "softplus": _softplus,
    "htanh": _hardtanh,
    "sigmoid": jax.nn.sigmoid,
    "hsigmoid": _hardsigmoid,
    "tanhshrink": _tanhshrink,
}


def _round_up(x, m):
    return ((x + m - 1) // m) * m


# ------------------------------- kernel -------------------------------------
def _skipnet_kernel(z_ref, w1_ref, b1_ref, w2_ref, b2_ref, o_ref, *,
                    num_layers, act_fn):
    """Fused forward: z <- z + act(z @ W1[l] + b1[l]) @ W2[l] + b2[l], all layers.

    z stays in VMEM/vregs across the (statically unrolled) layer loop; the
    zero-padded weight columns/rows guarantee padded lanes of z remain zero.
    """
    z = z_ref[...]                                   # (B_pad, F_pad) f32
    for l in range(num_layers):                      # static unrolled layer loop
        h = jnp.dot(z, w1_ref[l], preferred_element_type=jnp.float32) + b1_ref[l]
        a = act_fn(h)
        z = z + jnp.dot(a, w2_ref[l], preferred_element_type=jnp.float32) + b2_ref[l]
    o_ref[...] = z.astype(o_ref.dtype)


@functools.lru_cache(maxsize=None)
def _build_forward(B, N, num_layers, F_pad, H_pad, activation):
    """Build (once per shape signature) the jitted fused forward function."""
    act_fn = _ACTIVATIONS[activation]
    B_pad = _round_up(max(B, 8), 8)       # sublane-aligned batch
    two_n = 2 * N

    kernel = functools.partial(
        _skipnet_kernel, num_layers=num_layers, act_fn=act_fn)

    call = pl.pallas_call(
        kernel,
        out_shape=jax.ShapeDtypeStruct((B_pad, F_pad), jnp.float32),
        grid=(1,),
        in_specs=[
            pl.BlockSpec((B_pad, F_pad), lambda i: (0, 0)),                 # z
            pl.BlockSpec((num_layers, F_pad, H_pad), lambda i: (0, 0, 0)),  # W1 stack
            pl.BlockSpec((num_layers, 1, H_pad), lambda i: (0, 0, 0)),      # b1 stack
            pl.BlockSpec((num_layers, H_pad, F_pad), lambda i: (0, 0, 0)),  # W2 stack
            pl.BlockSpec((num_layers, 1, F_pad), lambda i: (0, 0, 0)),      # b2 stack
        ],
        out_specs=pl.BlockSpec((B_pad, F_pad), lambda i: (0, 0)),
        compiler_params=pltpu.CompilerParams(
            dimension_semantics=("arbitrary",),
            vmem_limit_bytes=32 * 1024 * 1024,   # well within v7x's 64 MiB VMEM
        ),
    )

    def fwd(q, p, w1, b1, w2, b2):
        # concat + lane-dense zero-pad happen under jit, fused by XLA.
        z = jnp.concatenate(
            [q.astype(jnp.float32), p.astype(jnp.float32)], axis=-1)  # (B, 2N)
        z = jnp.pad(z, ((0, B_pad - B), (0, F_pad - two_n)))
        z = call(z, w1, b1, w2, b2)
        z = z[:B]
        return z[:, :N], z[:, N:two_n]

    return jax.jit(fwd)


# ------------------------------ SkipNet -------------------------------------
class SkipNet:
    """JAX/Pallas port of the PyTorch SkipNet module (fused single kernel)."""

    def __init__(self, layer_sizes, N, h, activation, key):
        self.N = N
        self.activation = activation
        self.act_fn = _ACTIVATIONS[activation]
        two_n = 2 * N
        hidden = [int(layer_sizes[i]) for i in range(1, len(layer_sizes))]
        self.num_layers = len(hidden)
        self.F_pad = _round_up(two_n, 128)
        self.H_pad = _round_up(max(hidden), 128)

        params_ref = []
        w1s, b1s, w2s, b2s = [], [], [], []
        for H in hidden:
            key, k1, k2 = jax.random.split(key, 3)
            # L1: nn.init.normal_ with std ~ h (intent of gain=h), zero bias.
            w1 = (h * jax.random.normal(k1, (H, two_n), jnp.float32)).T   # (2N, H)
            b1 = jnp.zeros((1, H), jnp.float32)
            # L2: xavier_normal_, zero bias.
            std2 = jnp.sqrt(2.0 / (H + two_n)).astype(jnp.float32)
            w2 = (std2 * jax.random.normal(k2, (two_n, H), jnp.float32)).T  # (H, 2N)
            b2 = jnp.zeros((1, two_n), jnp.float32)
            params_ref.append((w1, b1, w2, b2))
            # zero-pad to lane-dense common sizes and stack across layers
            w1s.append(jnp.pad(w1, ((0, self.F_pad - two_n), (0, self.H_pad - H))))
            b1s.append(jnp.pad(b1, ((0, 0), (0, self.H_pad - H))))
            w2s.append(jnp.pad(w2, ((0, self.H_pad - H), (0, self.F_pad - two_n))))
            b2s.append(jnp.pad(b2, ((0, 0), (0, self.F_pad - two_n))))

        self.params_ref = params_ref                       # unpadded, for reference
        self.w1 = jnp.stack(w1s)                           # (L, F_pad, H_pad)
        self.b1 = jnp.stack(b1s)                           # (L, 1, H_pad)
        self.w2 = jnp.stack(w2s)                           # (L, H_pad, F_pad)
        self.b2 = jnp.stack(b2s)                           # (L, 1, F_pad)

    def __call__(self, q, p):
        B, N = q.shape
        assert N == self.N
        fwd = _build_forward(B, N, self.num_layers, self.F_pad, self.H_pad,
                             self.activation)
        return fwd(q, p, self.w1, self.b1, self.w2, self.b2)

    # pure-JAX reference (for correctness check)
    def reference(self, q, p):
        z = jnp.concatenate([q, p], axis=-1)
        for (w1, b1, w2, b2) in self.params_ref:
            z = z + (self.act_fn(z @ w1 + b1) @ w2 + b2)
        N = self.N
        return z[..., :N], z[..., N:]


# -------------------------------- main ---------------------------------------
if __name__ == "__main__":
    key = jax.random.PRNGKey(0)
    key, kq, kp, kw = jax.random.split(key, 4)

    B, N = 8, 16                       # batch, phase-space half-dim
    layer_sizes = [2 * N, 32, 48]      # first entry unused (matches PyTorch loop)
    h_gain = 0.1
    activation = "tanh"

    net = SkipNet(layer_sizes, N, h_gain, activation, kw)

    q = jax.random.normal(kq, (B, N), jnp.float32)
    p = jax.random.normal(kp, (B, N), jnp.float32)

    q_out, p_out = net(q, p)
    jax.block_until_ready((q_out, p_out))

    # second call exercises the cached/jitted path (no re-trace)
    q_out, p_out = net(q, p)
    jax.block_until_ready((q_out, p_out))

    q_ref, p_ref = net.reference(q, p)
    assert q_out.shape == (B, N) and p_out.shape == (B, N)
    assert jnp.allclose(q_out, q_ref, atol=1e-5, rtol=1e-5)
    assert jnp.allclose(p_out, p_ref, atol=1e-5, rtol=1e-5)

    print("KERNEL_OK")
</pallas_src>

<mosaic_0001>
module attributes {stable_mosaic.version = 11 : i64} {
  func.func @_skipnet_kernel(%arg0: i32, %arg1: memref<8x128xf32, #tpu.memory_space<vmem>>, %arg2: memref<2x128x128xf32, #tpu.memory_space<vmem>>, %arg3: memref<2x1x128xf32, #tpu.memory_space<vmem>>, %arg4: memref<2x128x128xf32, #tpu.memory_space<vmem>>, %arg5: memref<2x1x128xf32, #tpu.memory_space<vmem>>, %arg6: memref<8x128xf32, #tpu.memory_space<vmem>>) attributes {dimension_semantics = [#tpu.dimension_semantics<arbitrary>], iteration_bounds = array<i64: 1>, scalar_prefetch = 0 : i64, scratch_operands = 0 : i64, tpu.core_type = #tpu.core_type<tc>, window_params = [{pipeline_mode = #tpu.pipeline_mode<synchronous>, transform_indices = @transform_0, window_bounds = array<i64: 8, 128>}, {pipeline_mode = #tpu.pipeline_mode<synchronous>, transform_indices = @transform_1, window_bounds = array<i64: 2, 128, 128>}, {pipeline_mode = #tpu.pipeline_mode<synchronous>, transform_indices = @transform_2, window_bounds = array<i64: 2, 1, 128>}, {pipeline_mode = #tpu.pipeline_mode<synchronous>, transform_indices = @transform_3, window_bounds = array<i64: 2, 128, 128>}, {pipeline_mode = #tpu.pipeline_mode<synchronous>, transform_indices = @transform_4, window_bounds = array<i64: 2, 1, 128>}, {pipeline_mode = #tpu.pipeline_mode<synchronous>, transform_indices = @transform_5, window_bounds = array<i64: 8, 128>}]} {
    %c0 = arith.constant 0 : index
    %c0_0 = arith.constant 0 : index
    %0 = vector.load %arg1[%c0, %c0_0] : memref<8x128xf32, #tpu.memory_space<vmem>>, vector<8x128xf32>
    %c0_1 = arith.constant 0 : index
    %c0_2 = arith.constant 0 : index
    %c0_3 = arith.constant 0 : index
    %1 = vector.load %arg2[%c0_1, %c0_2, %c0_3] : memref<2x128x128xf32, #tpu.memory_space<vmem>>, vector<1x128x128xf32>
    %2 = vector.shape_cast %1 : vector<1x128x128xf32> to vector<128x128xf32>
    %cst = arith.constant dense<0.000000e+00> : vector<8x128xf32>
    %3 = tpu.matmul %0, %2, %cst {dimension_numbers = #tpu.dot_dimension_numbers<[1], [0], [0], [1], [0, 0, 1, 1], [], []>} : vector<8x128xf32>, vector<128x128xf32>, vector<8x128xf32> -> vector<8x128xf32>
    %c0_4 = arith.constant 0 : index
    %c0_5 = arith.constant 0 : index
    %c0_6 = arith.constant 0 : index
    %4 = vector.load %arg3[%c0_4, %c0_5, %c0_6] : memref<2x1x128xf32, #tpu.memory_space<vmem>>, vector<1x1x128xf32>
    %5 = vector.shape_cast %4 : vector<1x1x128xf32> to vector<1x128xf32>
    %6 = vector.broadcast %5 : vector<1x128xf32> to vector<8x128xf32>
    %7 = arith.addf %3, %6 : vector<8x128xf32>
    %8 = math.tanh %7 : vector<8x128xf32>
    %c0_7 = arith.constant 0 : index
    %c0_8 = arith.constant 0 : index
    %c0_9 = arith.constant 0 : index
    %9 = vector.load %arg4[%c0_7, %c0_8, %c0_9] : memref<2x128x128xf32, #tpu.memory_space<vmem>>, vector<1x128x128xf32>
    %10 = vector.shape_cast %9 : vector<1x128x128xf32> to vector<128x128xf32>
    %cst_10 = arith.constant dense<0.000000e+00> : vector<8x128xf32>
    %11 = tpu.matmul %8, %10, %cst_10 {dimension_numbers = #tpu.dot_dimension_numbers<[1], [0], [0], [1], [0, 0, 1, 1], [], []>} : vector<8x128xf32>, vector<128x128xf32>, vector<8x128xf32> -> vector<8x128xf32>
    %12 = arith.addf %0, %11 : vector<8x128xf32>
    %c0_11 = arith.constant 0 : index
    %c0_12 = arith.constant 0 : index
    %c0_13 = arith.constant 0 : index
    %13 = vector.load %arg5[%c0_11, %c0_12, %c0_13] : memref<2x1x128xf32, #tpu.memory_space<vmem>>, vector<1x1x128xf32>
    %14 = vector.shape_cast %13 : vector<1x1x128xf32> to vector<1x128xf32>
    %15 = vector.broadcast %14 : vector<1x128xf32> to vector<8x128xf32>
    %16 = arith.addf %12, %15 : vector<8x128xf32>
    %c1 = arith.constant 1 : index
    %c0_14 = arith.constant 0 : index
    %c0_15 = arith.constant 0 : index
    %17 = vector.load %arg2[%c1, %c0_14, %c0_15] : memref<2x128x128xf32, #tpu.memory_space<vmem>>, vector<1x128x128xf32>
    %18 = vector.shape_cast %17 : vector<1x128x128xf32> to vector<128x128xf32>
    %cst_16 = arith.constant dense<0.000000e+00> : vector<8x128xf32>
    %19 = tpu.matmul %16, %18, %cst_16 {dimension_numbers = #tpu.dot_dimension_numbers<[1], [0], [0], [1], [0, 0, 1, 1], [], []>} : vector<8x128xf32>, vector<128x128xf32>, vector<8x128xf32> -> vector<8x128xf32>
    %c1_17 = arith.constant 1 : index
    %c0_18 = arith.constant 0 : index
    %c0_19 = arith.constant 0 : index
    %20 = vector.load %arg3[%c1_17, %c0_18, %c0_19] : memref<2x1x128xf32, #tpu.memory_space<vmem>>, vector<1x1x128xf32>
    %21 = vector.shape_cast %20 : vector<1x1x128xf32> to vector<1x128xf32>
    %22 = vector.broadcast %21 : vector<1x128xf32> to vector<8x128xf32>
    %23 = arith.addf %19, %22 : vector<8x128xf32>
    %24 = math.tanh %23 : vector<8x128xf32>
    %c1_20 = arith.constant 1 : index
    %c0_21 = arith.constant 0 : index
    %c0_22 = arith.constant 0 : index
    %25 = vector.load %arg4[%c1_20, %c0_21, %c0_22] : memref<2x128x128xf32, #tpu.memory_space<vmem>>, vector<1x128x128xf32>
    %26 = vector.shape_cast %25 : vector<1x128x128xf32> to vector<128x128xf32>
    %cst_23 = arith.constant dense<0.000000e+00> : vector<8x128xf32>
    %27 = tpu.matmul %24, %26, %cst_23 {dimension_numbers = #tpu.dot_dimension_numbers<[1], [0], [0], [1], [0, 0, 1, 1], [], []>} : vector<8x128xf32>, vector<128x128xf32>, vector<8x128xf32> -> vector<8x128xf32>
    %28 = arith.addf %16, %27 : vector<8x128xf32>
    %c1_24 = arith.constant 1 : index
    %c0_25 = arith.constant 0 : index
    %c0_26 = arith.constant 0 : index
    %29 = vector.load %arg5[%c1_24, %c0_25, %c0_26] : memref<2x1x128xf32, #tpu.memory_space<vmem>>, vector<1x1x128xf32>
    %30 = vector.shape_cast %29 : vector<1x1x128xf32> to vector<1x128xf32>
    %31 = vector.broadcast %30 : vector<1x128xf32> to vector<8x128xf32>
    %32 = arith.addf %28, %31 : vector<8x128xf32>
    %c0_27 = arith.constant 0 : index
    %c0_28 = arith.constant 0 : index
    %33 = vector.load %arg6[%c0_27, %c0_28] : memref<8x128xf32, #tpu.memory_space<vmem>>, vector<8x128xf32>
    tpu.vector_store %arg6[%c0_27, %c0_28], %32 {strides = array<i32>} : memref<8x128xf32, #tpu.memory_space<vmem>>, vector<8x128xf32>,
    return
  }
  func.func @transform_0(%arg0: i32) -> (i32, i32) {
    %c0_i32 = arith.constant 0 : i32
    %c0_i32_0 = arith.constant 0 : i32
    %c0_i32_1 = arith.constant 0 : i32
    return %c0_i32, %c0_i32_0 : i32, i32
  }
  func.func @transform_1(%arg0: i32) -> (i32, i32, i32) {
    %c0_i32 = arith.constant 0 : i32
    %c0_i32_0 = arith.constant 0 : i32
    %c0_i32_1 = arith.constant 0 : i32
    %c0_i32_2 = arith.constant 0 : i32
    return %c0_i32, %c0_i32_0, %c0_i32_1 : i32, i32, i32
  }
  func.func @transform_2(%arg0: i32) -> (i32, i32, i32) {
    %c0_i32 = arith.constant 0 : i32
    %c0_i32_0 = arith.constant 0 : i32
    %c0_i32_1 = arith.constant 0 : i32
    %c0_i32_2 = arith.constant 0 : i32
    return %c0_i32, %c0_i32_0, %c0_i32_1 : i32, i32, i32
  }
  func.func @transform_3(%arg0: i32) -> (i32, i32, i32) {
    %c0_i32 = arith.constant 0 : i32
    %c0_i32_0 = arith.constant 0 : i32
    %c0_i32_1 = arith.constant 0 : i32
    %c0_i32_2 = arith.constant 0 : i32
    return %c0_i32, %c0_i32_0, %c0_i32_1 : i32, i32, i32
  }
  func.func @transform_4(%arg0: i32) -> (i32, i32, i32) {
    %c0_i32 = arith.constant 0 : i32
    %c0_i32_0 = arith.constant 0 : i32
    %c0_i32_1 = arith.constant 0 : i32
    %c0_i32_2 = arith.constant 0 : i32
    return %c0_i32, %c0_i32_0, %c0_i32_1 : i32, i32, i32
  }
  func.func @transform_5(%arg0: i32) -> (i32, i32) {
    %c0_i32 = arith.constant 0 : i32
    %c0_i32_0 = arith.constant 0 : i32
    %c0_i32_1 = arith.constant 0 : i32
    return %c0_i32, %c0_i32_0 : i32, i32
  }
}

</mosaic_0001>

<llo_original>
// kernel: fwd.1
$region0: #{fwd.1}
  #allocation0 [shape = 'u32[]', space=smem, size = 0x4, offset = 0x4, fixed_abs, tag = 'smem constant byte address 0x4 - core index']
  #allocation1 [shape = 'u32[144,128]{1,0:T(1,128)}', space=vmem, size = 0x12000, scoped, tag = 'internal scratch']
  %s0 = inlined_call_operand.vmem [shape: f32[8,128], index: 0, kind: input, shape index: {}]
  %s1 = inlined_call_operand.hbm [shape: f32[2,128,128], index: 1, kind: input, shape index: {}]
  %s2 = inlined_call_operand.vmem [shape: f32[2,1,128], index: 2, kind: input, shape index: {}]
  %s3 = inlined_call_operand.hbm [shape: f32[2,128,128], index: 3, kind: input, shape index: {}]
  %s4 = inlined_call_operand.vmem [shape: f32[2,1,128], index: 4, kind: input, shape index: {}]
  %s5 = inlined_call_operand.vmem [shape: f32[8,128], index: 5, kind: output, shape index: {}]
  %s6 = sld [smem:[#allocation0]]
  $region38: #{fwd.1} parent=0
    _
  %s8 = ssub.s32 1, %s6
  %s9 = scalar_select 0, %s8, %s6
  $region1: #{fwd.1} parent=0
    #allocation2 [shape = 'u8[131072]{0}', space=vmem, size = 0x20000, scoped, tag = 'input window, operand 1, single buffered']
    #allocation3 [shape = 's32[1]{0}', space=sflag, size = 0x4, scoped, tag = 'scoped memory for fwd.1']
    #allocation4 [shape = 'u8[131072]{0}', space=vmem, size = 0x20000, scoped, tag = 'input window, operand 3, single buffered']
    #allocation5 [shape = 's32[1]{0}', space=sflag, size = 0x4, scoped, tag = 'scoped memory for fwd.1']
    %10 = vsyncpa [#allocation3], 0
    %11 = vsyncpa [#allocation5], 0
    // Predicated region
    $region2: #{fwd.1} parent=1 // pred_check
      _
    $region3: #{fwd.1} parent=1 // pred_check_branch
      %13 = sbr.rel (0) target = $region5
    $region4: #{fwd.1} parent=1 // pred_region
      _
    $region5: #{fwd.1} parent=1 // pred_fallthru
      _
    // Predicated region
    $region6: #{fwd.1} parent=1 // pred_check
      _
    $region7: #{fwd.1} parent=1 // pred_check_branch
      %15 = sbr.rel (0) target = $region9
    $region8: #{fwd.1} parent=1 // pred_region
      %s17 = ssub.s32 4096, 4096
      %18 = vsyncadd [#allocation3], %s17
      %s19 = sshll.u32 [#allocation2], 4
      %s20 = int_to_ptr.vmem [resolvable:$true] %s19
      %25 = dma.hbm_to_vmem [thread:$0]  %s1, 4096, %s20, [#allocation3], 128, 128, 8
    $region9: #{fwd.1} parent=1 // pred_fallthru
      _
    // Predicated region
    $region10: #{fwd.1} parent=1 // pred_check
      _
    $region11: #{fwd.1} parent=1 // pred_check_branch
      %27 = sbr.rel (0) target = $region13
    $region12: #{fwd.1} parent=1 // pred_region
      _
    $region13: #{fwd.1} parent=1 // pred_fallthru
      _
    // Predicated region
    $region14: #{fwd.1} parent=1 // pred_check
      _
    $region15: #{fwd.1} parent=1 // pred_check_branch
      %29 = sbr.rel (0) target = $region17
    $region16: #{fwd.1} parent=1 // pred_region
      %s31 = ssub.s32 4096, 4096
      %32 = vsyncadd [#allocation5], %s31
      %s33 = sshll.u32 [#allocation4], 4
      %s34 = int_to_ptr.vmem [resolvable:$true] %s33
      %39 = dma.hbm_to_vmem [thread:$0]  %s3, 4096, %s34, [#allocation5], 128, 128, 8
    $region17: #{fwd.1} parent=1 // pred_fallthru
      _
    // Predicated region
    $region18: #{fwd.1} parent=1 // pred_check
      _
    $region19: #{fwd.1} parent=1 // pred_check_branch
      %41 = sbr.rel (0) target = $region21
    $region20: #{fwd.1} parent=1 // pred_region
      _
    $region21: #{fwd.1} parent=1 // pred_fallthru
      _
    // Predicated region
    $region22: #{fwd.1} parent=1 // pred_check
      _
    $region23: #{fwd.1} parent=1 // pred_check_branch
      %43 = sbr.rel (0) target = $region25
    $region24: #{fwd.1} parent=1 // pred_region
      %44 = dma.done [#allocation3], 4096
    $region25: #{fwd.1} parent=1 // pred_fallthru
      _
    // Predicated region
    $region26: #{fwd.1} parent=1 // pred_check
      _
    $region27: #{fwd.1} parent=1 // pred_check_branch
      %46 = sbr.rel (0) target = $region29
    $region28: #{fwd.1} parent=1 // pred_region
      %47 = dma.done [#allocation5], 4096
    $region29: #{fwd.1} parent=1 // pred_fallthru
      _
    %v48 = vld [vmem:[%s0] sm:$0xff]
    %v49 = vld [vmem:[#allocation2] sm:$0xff]
    %v50 = vld [vmem:[#allocation2 + $0x8] sm:$0xff]
    %v51 = vld [vmem:[#allocation2 + $0x10] sm:$0xff]
    %v52 = vld [vmem:[#allocation2 + $0x18] sm:$0xff]
    %v53 = vld [vmem:[#allocation2 + $0x20] sm:$0xff]
    %v54 = vld [vmem:[#allocation2 + $0x28] sm:$0xff]
    %v55 = vld [vmem:[#allocation2 + $0x30] sm:$0xff]
    %v56 = vld [vmem:[#allocation2 + $0x38] sm:$0xff]
    %v57 = vld [vmem:[#allocation2 + $0x40] sm:$0xff]
    %v58 = vld [vmem:[#allocation2 + $0x48] sm:$0xff]
    %v59 = vld [vmem:[#allocation2 + $0x50] sm:$0xff]
    %v60 = vld [vmem:[#allocation2 + $0x58] sm:$0xff]
    %v61 = vld [vmem:[#allocation2 + $0x60] sm:$0xff]
    %v62 = vld [vmem:[#allocation2 + $0x68] sm:$0xff]
    %v63 = vld [vmem:[#allocation2 + $0x70] sm:$0xff]
    %v64 = vld [vmem:[#allocation2 + $0x78] sm:$0xff]
    %v65 = vld [vmem:[%s2] sm:$0x1]
    %v67 = vlaneseq
    %v68 = vshrl.u32 %v67, 7
    %v69 = vsub.s32 0, %v68
    %v70 = vrot.slane %v65, %v69
    %72 = vmatprep.subr.mxu0 0.0
    %73 = vmatpush1.msra.mxu0 %v49
    %74 = vmatprep.subr.mxu0 0.0
    %75 = vmatpush1.msra.mxu0 %v50
    %76 = vmatprep.subr.mxu0 0.0
    %77 = vmatpush1.msra.mxu0 %v51
    %78 = vmatprep.subr.mxu0 0.0
    %79 = vmatpush1.msra.mxu0 %v52
    %80 = vmatprep.subr.mxu0 0.0
    %81 = vmatpush1.msra.mxu0 %v53
    %82 = vmatprep.subr.mxu0 0.0
    %83 = vmatpush1.msra.mxu0 %v54
    %84 = vmatprep.subr.mxu0 0.0
    %85 = vmatpush1.msra.mxu0 %v55
    %86 = vmatprep.subr.mxu0 0.0
    %87 = vmatpush1.msra.mxu0 %v56
    %88 = vmatprep.subr.mxu0 0.0
    %89 = vmatpush1.msra.mxu0 %v57
    %90 = vmatprep.subr.mxu0 0.0
    %91 = vmatpush1.msra.mxu0 %v58
    %92 = vmatprep.subr.mxu0 0.0
    %93 = vmatpush1.msra.mxu0 %v59
    %94 = vmatprep.subr.mxu0 0.0
    %95 = vmatpush1.msra.mxu0 %v60
    %96 = vmatprep.subr.mxu0 0.0
    %97 = vmatpush1.msra.mxu0 %v61
    %98 = vmatprep.subr.mxu0 0.0
    %99 = vmatpush1.msra.mxu0 %v62
    %100 = vmatprep.subr.mxu0 0.0
    %101 = vmatpush1.msra.mxu0 %v63
    %102 = vmatprep.subr.mxu0 0.0
    %103 = vmatpush1.msra.mxu0 %v64
    %104 = vmatprep.subr.mxu0 0.0
    %105 = vmatpush1.msra.mxu0 0.0
    %106 = vmatprep.subr.mxu0 0.0
    %107 = vmatpush1.msra.mxu0 0.0
    %108 = vmatprep.subr.mxu0 0.0
    %109 = vmatpush1.msra.mxu0 0.0
    %110 = vmatprep.subr.mxu0 0.0
    %111 = vmatpush1.msra.mxu0 0.0
    %112 = vmatprep.subr.mxu0 0.0
    %113 = vmatpush1.msra.mxu0 0.0
    %114 = vmatprep.subr.mxu0 0.0
    %115 = vmatpush1.msra.mxu0 0.0
    %116 = vmatprep.subr.mxu0 0.0
    %117 = vmatpush1.msra.mxu0 0.0
    %118 = vmatprep.subr.mxu0 0.0
    %119 = vmatpush1.msra.mxu0 0.0
    %120 = vmatprep.subr.mxu0 0.0
    %121 = vmatpush1.msra.mxu0 0.0
    %122 = vmatprep.subr.mxu0 0.0
    %123 = vmatpush1.msra.mxu0 0.0
    %124 = vmatprep.subr.mxu0 0.0
    %125 = vmatpush1.msra.mxu0 0.0
    %126 = vmatprep.subr.mxu0 0.0
    %127 = vmatpush1.msra.mxu0 0.0
    %128 = vmatprep.subr.mxu0 0.0
    %129 = vmatpush1.msra.mxu0 0.0
    %130 = vmatprep.subr.mxu0 0.0
    %131 = vmatpush1.msra.mxu0 0.0
    %132 = vmatprep.subr.mxu0 0.0
    %133 = vmatpush1.msra.mxu0 0.0
    %134 = vmatprep.subr.mxu0 0.0
    %135 = vmatpush1.msra.mxu0 0.0
    %136 = vmatprep.mubr.f32.mxu0 0.0
    %137 = vmatmul.mubr.f32.gmra.mrb[0].mxu0 %v48
    %v138 = vpop.f32.mrb[0].mxu0
    %v139 = vadd.f32 %v70, %v138
    %v140 = vpop.f32.mrb[0].mxu0
    %141 = vdwg.mxu0
    %v142 = vtanh.pop %v139
    %v143 = vld [vmem:[#allocation4] sm:$0xff]
    %v144 = vld [vmem:[#allocation4 + $0x8] sm:$0xff]
    %v145 = vld [vmem:[#allocation4 + $0x10] sm:$0xff]
    %v146 = vld [vmem:[#allocation4 + $0x18] sm:$0xff]
    %v147 = vld [vmem:[#allocation4 + $0x20] sm:$0xff]
    %v148 = vld [vmem:[#allocation4 + $0x28] sm:$0xff]
    %v149 = vld [vmem:[#allocation4 + $0x30] sm:$0xff]
    %v150 = vld [vmem:[#allocation4 + $0x38] sm:$0xff]
    %v151 = vld [vmem:[#allocation4 + $0x40] sm:$0xff]
    %v152 = vld [vmem:[#allocation4 + $0x48] sm:$0xff]
    %v153 = vld [vmem:[#allocation4 + $0x50] sm:$0xff]
    %v154 = vld [vmem:[#allocation4 + $0x58] sm:$0xff]
    %v155 = vld [vmem:[#allocation4 + $0x60] sm:$0xff]
    %v156 = vld [vmem:[#allocation4 + $0x68] sm:$0xff]
    %v157 = vld [vmem:[#allocation4 + $0x70] sm:$0xff]
    %v158 = vld [vmem:[#allocation4 + $0x78] sm:$0xff]
    %159 = vmatprep.subr.mxu0 0.0
    %160 = vmatpush1.msra.mxu0 %v143
    %161 = vmatprep.subr.mxu0 0.0
    %162 = vmatpush1.msra.mxu0 %v144
    %163 = vmatprep.subr.mxu0 0.0
    %164 = vmatpush1.msra.mxu0 %v145
    %165 = vmatprep.subr.mxu0 0.0
    %166 = vmatpush1.msra.mxu0 %v146
    %167 = vmatprep.subr.mxu0 0.0
    %168 = vmatpush1.msra.mxu0 %v147
    %169 = vmatprep.subr.mxu0 0.0
    %170 = vmatpush1.msra.mxu0 %v148
    %171 = vmatprep.subr.mxu0 0.0
    %172 = vmatpush1.msra.mxu0 %v149
    %173 = vmatprep.subr.mxu0 0.0
    %174 = vmatpush1.msra.mxu0 %v150
    %175 = vmatprep.subr.mxu0 0.0
    %176 = vmatpush1.msra.mxu0 %v151
    %177 = vmatprep.subr.mxu0 0.0
    %178 = vmatpush1.msra.mxu0 %v152
    %179 = vmatprep.subr.mxu0 0.0
    %180 = vmatpush1.msra.mxu0 %v153
    %181 = vmatprep.subr.mxu0 0.0
    %182 = vmatpush1.msra.mxu0 %v154
    %183 = vmatprep.subr.mxu0 0.0
    %184 = vmatpush1.msra.mxu0 %v155
    %185 = vmatprep.subr.mxu0 0.0
    %186 = vmatpush1.msra.mxu0 %v156
    %187 = vmatprep.subr.mxu0 0.0
    %188 = vmatpush1.msra.mxu0 %v157
    %189 = vmatprep.subr.mxu0 0.0
    %190 = vmatpush1.msra.mxu0 %v158
    %191 = vmatprep.subr.mxu0 0.0
    %192 = vmatpush1.msra.mxu0 0.0
    %193 = vmatprep.subr.mxu0 0.0
    %194 = vmatpush1.msra.mxu0 0.0
    %195 = vmatprep.subr.mxu0 0.0
    %196 = vmatpush1.msra.mxu0 0.0
    %197 = vmatprep.subr.mxu0 0.0
    %198 = vmatpush1.msra.mxu0 0.0
    %199 = vmatprep.subr.mxu0 0.0
    %200 = vmatpush1.msra.mxu0 0.0
    %201 = vmatprep.subr.mxu0 0.0
    %202 = vmatpush1.msra.mxu0 0.0
    %203 = vmatprep.subr.mxu0 0.0
    %204 = vmatpush1.msra.mxu0 0.0
    %205 = vmatprep.subr.mxu0 0.0
    %206 = vmatpush1.msra.mxu0 0.0
    %207 = vmatprep.subr.mxu0 0.0
    %208 = vmatpush1.msra.mxu0 0.0
    %209 = vmatprep.subr.mxu0 0.0
    %210 = vmatpush1.msra.mxu0 0.0
    %211 = vmatprep.subr.mxu0 0.0
    %212 = vmatpush1.msra.mxu0 0.0
    %213 = vmatprep.subr.mxu0 0.0
    %214 = vmatpush1.msra.mxu0 0.0
    %215 = vmatprep.subr.mxu0 0.0
    %216 = vmatpush1.msra.mxu0 0.0
    %217 = vmatprep.subr.mxu0 0.0
    %218 = vmatpush1.msra.mxu0 0.0
    %219 = vmatprep.subr.mxu0 0.0
    %220 = vmatpush1.msra.mxu0 0.0
    %221 = vmatprep.subr.mxu0 0.0
    %222 = vmatpush1.msra.mxu0 0.0
    %223 = vmatprep.mubr.f32.mxu0 0.0
    %224 = vmatmul.mubr.f32.gmra.mrb[0].mxu0 %v142
    %v225 = vpop.f32.mrb[0].mxu0
    %v226 = vadd.f32 0.0, %v225
    %v227 = vpop.f32.mrb[0].mxu0
    %228 = vdwg.mxu0
    %v229 = vadd.f32 %v48, %v226
    %v230 = vld [vmem:[%s4] sm:$0x1]
    %v232 = vlaneseq
    %v233 = vshrl.u32 %v232, 7
    %v234 = vsub.s32 0, %v233
    %v235 = vrot.slane %v230, %v234
    %v237 = vadd.f32 %v229, %v235
    %s238 = scalar_lea.vmem [#allocation2], 128
    %v239 = vld [vmem:[%s238] sm:$0xff]
    %v240 = vld [vmem:[%s238 + $0x8] sm:$0xff]
    %v241 = vld [vmem:[%s238 + $0x10] sm:$0xff]
    %v242 = vld [vmem:[%s238 + $0x18] sm:$0xff]
    %v243 = vld [vmem:[%s238 + $0x20] sm:$0xff]
    %v244 = vld [vmem:[%s238 + $0x28] sm:$0xff]
    %v245 = vld [vmem:[%s238 + $0x30] sm:$0xff]
    %v246 = vld [vmem:[%s238 + $0x38] sm:$0xff]
    %v247 = vld [vmem:[%s238 + $0x40] sm:$0xff]
    %v248 = vld [vmem:[%s238 + $0x48] sm:$0xff]
    %v249 = vld [vmem:[%s238 + $0x50] sm:$0xff]
    %v250 = vld [vmem:[%s238 + $0x58] sm:$0xff]
    %v251 = vld [vmem:[%s238 + $0x60] sm:$0xff]
    %v252 = vld [vmem:[%s238 + $0x68] sm:$0xff]
    %v253 = vld [vmem:[%s238 + $0x70] sm:$0xff]
    %v254 = vld [vmem:[%s238 + $0x78] sm:$0xff]
    %s255 = scalar_lea.vmem %s2, 1
    %v256 = vld [vmem:[%s255] sm:$0x1]
    %v258 = vlaneseq
    %v259 = vshrl.u32 %v258, 7
    %v260 = vsub.s32 0, %v259
    %v261 = vrot.slane %v256, %v260
    %263 = vmatprep.subr.mxu0 0.0
    %264 = vmatpush1.msra.mxu0 %v239
    %265 = vmatprep.subr.mxu0 0.0
    %266 = vmatpush1.msra.mxu0 %v240
    %267 = vmatprep.subr.mxu0 0.0
    %268 = vmatpush1.msra.mxu0 %v241
    %269 = vmatprep.subr.mxu0 0.0
    %270 = vmatpush1.msra.mxu0 %v242
    %271 = vmatprep.subr.mxu0 0.0
    %272 = vmatpush1.msra.mxu0 %v243
    %273 = vmatprep.subr.mxu0 0.0
    %274 = vmatpush1.msra.mxu0 %v244
    %275 = vmatprep.subr.mxu0 0.0
    %276 = vmatpush1.msra.mxu0 %v245
    %277 = vmatprep.subr.mxu0 0.0
    %278 = vmatpush1.msra.mxu0 %v246
    %279 = vmatprep.subr.mxu0 0.0
    %280 = vmatpush1.msra.mxu0 %v247
    %281 = vmatprep.subr.mxu0 0.0
    %282 = vmatpush1.msra.mxu0 %v248
    %283 = vmatprep.subr.mxu0 0.0
    %284 = vmatpush1.msra.mxu0 %v249
    %285 = vmatprep.subr.mxu0 0.0
    %286 = vmatpush1.msra.mxu0 %v250
    %287 = vmatprep.subr.mxu0 0.0
    %288 = vmatpush1.msra.mxu0 %v251
    %289 = vmatprep.subr.mxu0 0.0
    %290 = vmatpush1.msra.mxu0 %v252
    %291 = vmatprep.subr.mxu0 0.0
    %292 = vmatpush1.msra.mxu0 %v253
    %293 = vmatprep.subr.mxu0 0.0
    %294 = vmatpush1.msra.mxu0 %v254
    %295 = vmatprep.subr.mxu0 0.0
    %296 = vmatpush1.msra.mxu0 0.0
    %297 = vmatprep.subr.mxu0 0.0
    %298 = vmatpush1.msra.mxu0 0.0
    %299 = vmatprep.subr.mxu0 0.0
    %300 = vmatpush1.msra.mxu0 0.0
    %301 = vmatprep.subr.mxu0 0.0
    %302 = vmatpush1.msra.mxu0 0.0
    %303 = vmatprep.subr.mxu0 0.0
    %304 = vmatpush1.msra.mxu0 0.0
    %305 = vmatprep.subr.mxu0 0.0
    %306 = vmatpush1.msra.mxu0 0.0
    %307 = vmatprep.subr.mxu0 0.0
    %308 = vmatpush1.msra.mxu0 0.0
    %309 = vmatprep.subr.mxu0 0.0
    %310 = vmatpush1.msra.mxu0 0.0
    %311 = vmatprep.subr.mxu0 0.0
    %312 = vmatpush1.msra.mxu0 0.0
    %313 = vmatprep.subr.mxu0 0.0
    %314 = vmatpush1.msra.mxu0 0.0
    %315 = vmatprep.subr.mxu0 0.0
    %316 = vmatpush1.msra.mxu0 0.0
    %317 = vmatprep.subr.mxu0 0.0
    %318 = vmatpush1.msra.mxu0 0.0
    %319 = vmatprep.subr.mxu0 0.0
    %320 = vmatpush1.msra.mxu0 0.0
    %321 = vmatprep.subr.mxu0 0.0
    %322 = vmatpush1.msra.mxu0 0.0
    %323 = vmatprep.subr.mxu0 0.0
    %324 = vmatpush1.msra.mxu0 0.0
    %325 = vmatprep.subr.mxu0 0.0
    %326 = vmatpush1.msra.mxu0 0.0
    %327 = vmatprep.mubr.f32.mxu0 0.0
    %328 = vmatmul.mubr.f32.gmra.mrb[0].mxu0 %v237
    %v329 = vpop.f32.mrb[0].mxu0
    %v330 = vadd.f32 %v261, %v329
    %v331 = vpop.f32.mrb[0].mxu0
    %332 = vdwg.mxu0
    %v333 = vtanh.pop %v330
    %s334 = scalar_lea.vmem [#allocation4], 128
    %v335 = vld [vmem:[%s334] sm:$0xff]
    %v336 = vld [vmem:[%s334 + $0x8] sm:$0xff]
    %v337 = vld [vmem:[%s334 + $0x10] sm:$0xff]
    %v338 = vld [vmem:[%s334 + $0x18] sm:$0xff]
    %v339 = vld [vmem:[%s334 + $0x20] sm:$0xff]
    %v340 = vld [vmem:[%s334 + $0x28] sm:$0xff]
    %v341 = vld [vmem:[%s334 + $0x30] sm:$0xff]
    %v342 = vld [vmem:[%s334 + $0x38] sm:$0xff]
    %v343 = vld [vmem:[%s334 + $0x40] sm:$0xff]
    %v344 = vld [vmem:[%s334 + $0x48] sm:$0xff]
    %v345 = vld [vmem:[%s334 + $0x50] sm:$0xff]
    %v346 = vld [vmem:[%s334 + $0x58] sm:$0xff]
    %v347 = vld [vmem:[%s334 + $0x60] sm:$0xff]
    %v348 = vld [vmem:[%s334 + $0x68] sm:$0xff]
    %v349 = vld [vmem:[%s334 + $0x70] sm:$0xff]
    %v350 = vld [vmem:[%s334 + $0x78] sm:$0xff]
    %351 = vmatprep.subr.mxu0 0.0
    %352 = vmatpush1.msra.mxu0 %v335
    %353 = vmatprep.subr.mxu0 0.0
    %354 = vmatpush1.msra.mxu0 %v336
    %355 = vmatprep.subr.mxu0 0.0
    %356 = vmatpush1.msra.mxu0 %v337
    %357 = vmatprep.subr.mxu0 0.0
    %358 = vmatpush1.msra.mxu0 %v338
    %359 = vmatprep.subr.mxu0 0.0
    %360 = vmatpush1.msra.mxu0 %v339
    %361 = vmatprep.subr.mxu0 0.0
    %362 = vmatpush1.msra.mxu0 %v340
    %363 = vmatprep.subr.mxu0 0.0
    %364 = vmatpush1.msra.mxu0 %v341
    %365 = vmatprep.subr.mxu0 0.0
    %366 = vmatpush1.msra.mxu0 %v342
    %367 = vmatprep.subr.mxu0 0.0
    %368 = vmatpush1.msra.mxu0 %v343
    %369 = vmatprep.subr.mxu0 0.0
    %370 = vmatpush1.msra.mxu0 %v344
    %371 = vmatprep.subr.mxu0 0.0
    %372 = vmatpush1.msra.mxu0 %v345
    %373 = vmatprep.subr.mxu0 0.0
    %374 = vmatpush1.msra.mxu0 %v346
    %375 = vmatprep.subr.mxu0 0.0
    %376 = vmatpush1.msra.mxu0 %v347
    %377 = vmatprep.subr.mxu0 0.0
    %378 = vmatpush1.msra.mxu0 %v348
    %379 = vmatprep.subr.mxu0 0.0
    %380 = vmatpush1.msra.mxu0 %v349
    %381 = vmatprep.subr.mxu0 0.0
    %382 = vmatpush1.msra.mxu0 %v350
    %383 = vmatprep.subr.mxu0 0.0
    %384 = vmatpush1.msra.mxu0 0.0
    %385 = vmatprep.subr.mxu0 0.0
    %386 = vmatpush1.msra.mxu0 0.0
    %387 = vmatprep.subr.mxu0 0.0
    %388 = vmatpush1.msra.mxu0 0.0
    %389 = vmatprep.subr.mxu0 0.0
    %390 = vmatpush1.msra.mxu0 0.0
    %391 = vmatprep.subr.mxu0 0.0
    %392 = vmatpush1.msra.mxu0 0.0
    %393 = vmatprep.subr.mxu0 0.0
    %394 = vmatpush1.msra.mxu0 0.0
    %395 = vmatprep.subr.mxu0 0.0
    %396 = vmatpush1.msra.mxu0 0.0
    %397 = vmatprep.subr.mxu0 0.0
    %398 = vmatpush1.msra.mxu0 0.0
    %399 = vmatprep.subr.mxu0 0.0
    %400 = vmatpush1.msra.mxu0 0.0
    %401 = vmatprep.subr.mxu0 0.0
    %402 = vmatpush1.msra.mxu0 0.0
    %403 = vmatprep.subr.mxu0 0.0
    %404 = vmatpush1.msra.mxu0 0.0
    %405 = vmatprep.subr.mxu0 0.0
    %406 = vmatpush1.msra.mxu0 0.0
    %407 = vmatprep.subr.mxu0 0.0
    %408 = vmatpush1.msra.mxu0 0.0
    %409 = vmatprep.subr.mxu0 0.0
    %410 = vmatpush1.msra.mxu0 0.0
    %411 = vmatprep.subr.mxu0 0.0
    %412 = vmatpush1.msra.mxu0 0.0
    %413 = vmatprep.subr.mxu0 0.0
    %414 = vmatpush1.msra.mxu0 0.0
    %415 = vmatprep.mubr.f32.mxu0 0.0
    %416 = vmatmul.mubr.f32.gmra.mrb[0].mxu0 %v333
    %v417 = vpop.f32.mrb[0].mxu0
    %v418 = vadd.f32 0.0, %v417
    %v419 = vpop.f32.mrb[0].mxu0
    %420 = vdwg.mxu0
    %v421 = vadd.f32 %v237, %v418
    %s422 = scalar_lea.vmem %s4, 1
    %v423 = vld [vmem:[%s422] sm:$0x1]
    %v425 = vlaneseq
    %v426 = vshrl.u32 %v425, 7
    %v427 = vsub.s32 0, %v426
    %v428 = vrot.slane %v423, %v427
    %v430 = vadd.f32 %v421, %v428
    %431 = vst [vmem:[%s5] sm:$0xff] %v430
    // Predicated region
    $region30: #{fwd.1} parent=1 // pred_check
      _
    $region31: #{fwd.1} parent=1 // pred_check_branch
      %433 = sbr.rel (0) target = $region33
    $region32: #{fwd.1} parent=1 // pred_region
      _
    $region33: #{fwd.1} parent=1 // pred_fallthru
      _
    // Predicated region
    $region34: #{fwd.1} parent=1 // pred_check
      _
    $region35: #{fwd.1} parent=1 // pred_check_branch
      %435 = sbr.rel (0) target = $region37
    $region36: #{fwd.1} parent=1 // pred_region
      _
    $region37: #{fwd.1} parent=1 // pred_fallthru
      _
    %436 = vsyncpa [#allocation3], 1
    %437 = vsyncpa [#allocation5], 1

</llo_original>
